<compile_context>
chip_gen: v7x
topology: tpu7x:2x2x1
jax: 0.10.0
libtpu: 0.0.40
codegen_flags: <defaults>
</compile_context>

<pallas_src>
import math

import jax
import jax.numpy as jnp
from jax import lax
from jax.experimental import pallas as pl
from jax.experimental.pallas import tpu as pltpu

LN_EPS = 1e-5            # nn.LayerNorm default eps
NEG_INF = -1e30
SQRT_2_OVER_PI = math.sqrt(2.0 / math.pi)

# ---------------- small-config stand-in for `Config` ----------------
EMBED_DIM = 32           # Config.embed_dim
D_IN_VISION = 64         # resnet34 fc.in_features stand-in (small)
D_IN_TEXT = 64           # Config.transformer_embed_dim stand-in (small)
VOCAB = 100
BATCH = 2
SEQ = 8

# padded, vreg-aligned working sizes
BP = 8                   # batch rows padded to the 8-sublane grain
DP = 128                 # lane dim of every working tile
VIS_OUT = 0              # vision embedding lives in lanes [0, 32)
TXT_IN = 64              # text features live in input lanes [64, 128)
TXT_OUT = 64             # text embedding lives in lanes [64, 96)

assert D_IN_VISION + D_IN_TEXT == DP  # merged-tower layout relies on this toy config


def _gelu(x):
    # TODO(synk): tanh-approximate GELU; PyTorch F.gelu default is the exact erf form
    # (erf has no Mosaic lowering; difference is negligible at these magnitudes).
    return 0.5 * x * (1.0 + jnp.tanh(SQRT_2_OVER_PI * (x + 0.044715 * x * x * x)))


def _sum_all(x):
    """Full reduction kept 2D -> (1, 1)."""
    return jnp.sum(jnp.sum(x, axis=1, keepdims=True), axis=0, keepdims=True)


# ======================= fused Pallas kernel =======================

def _clip_head(sim):
    """sim[(i=caption), (j=image)]; symmetric CLIP loss + retrieval accuracies, all (1,1)."""
    r = lax.broadcasted_iota(jnp.int32, sim.shape, 0)
    c = lax.broadcasted_iota(jnp.int32, sim.shape, 1)
    valid = (r < BATCH) & (c < BATCH)
    diag = ((r == c) & valid).astype(jnp.float32)
    logits = jnp.where(valid, sim, NEG_INF)
    inv_n = 1.0 / BATCH

    def mean_xent(axis):
        m = jnp.max(logits, axis=axis, keepdims=True)
        lse = jnp.log(jnp.sum(jnp.exp(logits - m), axis=axis, keepdims=True)) + m
        return -_sum_all(diag * (logits - lse)) * inv_n

    caption_loss = mean_xent(1)    # F.cross_entropy(similarity,   arange(n))
    image_loss = mean_xent(0)      # F.cross_entropy(similarity.T, arange(n))
    loss = 0.5 * (caption_loss + image_loss)

    # img_acc: row-argmax hits the diagonal; cap_acc: column-argmax hits the diagonal
    diag_r = jnp.sum(sim * diag, axis=1, keepdims=True)            # (BP, 1)
    diag_c = jnp.sum(sim * diag, axis=0, keepdims=True)            # (1, BP)
    row_ok = lax.broadcasted_iota(jnp.int32, diag_r.shape, 0) < BATCH
    col_ok = lax.broadcasted_iota(jnp.int32, diag_c.shape, 1) < BATCH
    img_acc = _sum_all(((diag_r >= jnp.max(logits, axis=1, keepdims=True)) & row_ok)
                       .astype(jnp.float32)) * inv_n
    cap_acc = _sum_all(((diag_c >= jnp.max(logits, axis=0, keepdims=True)) & col_ok)
                       .astype(jnp.float32)) * inv_n
    return loss, img_acc, cap_acc


def _clip_fused_kernel(x_ref, w_ref, gb_ref, out_ref):
    # ---- merged (block-diagonal) projection towers -------------------------------
    x = x_ref[...]                                   # (8, 128) f32: [vis_feat | txt_feat]
    xb = x.astype(jnp.bfloat16)
    w1 = w_ref[:, 0:DP]                              # (128, 128) bf16 block-diag linear1
    w2 = w_ref[:, DP:2 * DP]                         # (128, 128) bf16 block-diag linear2

    e1 = jnp.dot(xb, w1, preferred_element_type=jnp.float32)
    g = _gelu(e1)
    # TODO(synk): nn.Dropout(p=0.5) treated as eval-mode identity (deterministic kernel).
    e2 = jnp.dot(g.astype(jnp.bfloat16), w2, preferred_element_type=jnp.float32)
    s = e1 + e2                                      # vision @ lanes 0:32, text @ lanes 64:96

    gb = gb_ref[...]
    gamma = gb[0:1, :]                               # (1, 128): [v_gamma | 0 | t_gamma | 0]
    beta = gb[1:2, :]

    lane = lax.broadcasted_iota(jnp.int32, s.shape, 1)
    row = lax.broadcasted_iota(jnp.int32, s.shape, 0)
    in_vis = lane < TXT_OUT                          # lanes [0, 64): vision group region
    mlo = in_vis.astype(jnp.float32)

    # ---- segmented LayerNorm (per 32-lane group), single-pass stats ---------------
    inv_d = 1.0 / EMBED_DIM
    sum_all = jnp.sum(s, axis=-1, keepdims=True)
    sum_v = jnp.sum(s * mlo, axis=-1, keepdims=True)
    sum_t = sum_all - sum_v
    sq = s * s
    ssq_all = jnp.sum(sq, axis=-1, keepdims=True)
    ssq_v = jnp.sum(sq * mlo, axis=-1, keepdims=True)
    ssq_t = ssq_all - ssq_v
    mean_v = sum_v * inv_d
    mean_t = sum_t * inv_d
    rstd_v = lax.rsqrt(ssq_v * inv_d - mean_v * mean_v + LN_EPS)
    rstd_t = lax.rsqrt(ssq_t * inv_d - mean_t * mean_t + LN_EPS)
    ln = (s - jnp.where(in_vis, mean_v, mean_t)) * jnp.where(in_vis, rstd_v, rstd_t) \
        * gamma + beta                               # gamma/beta zero outside valid groups

    # ---- per-group L2 normalize ----------------------------------------------------
    ln2 = ln * ln
    n_all = jnp.sum(ln2, axis=-1, keepdims=True)
    n_v = jnp.sum(ln2 * mlo, axis=-1, keepdims=True)
    n_t = n_all - n_v
    rowpad = (lax.broadcasted_iota(jnp.int32, n_v.shape, 0) >= BATCH).astype(jnp.float32)
    inv_v = lax.rsqrt(n_v + rowpad)                  # rowpad keeps padded batch rows finite
    inv_t = lax.rsqrt(n_t + rowpad)
    emb = ln * jnp.where(in_vis, inv_v, inv_t)       # image emb @ 0:32, caption emb @ 64:96

    # ---- similarity = caption @ image.T --------------------------------------------
    # roll by 64 lanes is self-inverse: caption group lands on lanes 0:32 regardless of
    # rotation direction; masking the other operand to the vision group makes the
    # q.k^T-style contraction pick up exactly cap_i . img_j.
    cap_aligned = pltpu.roll(emb, shift=TXT_OUT, axis=1)
    img_only = emb * mlo
    sim = lax.dot_general(cap_aligned, img_only, (((1,), (1,)), ((), ())),
                          preferred_element_type=jnp.float32)       # (8, 8)

    loss, img_acc, cap_acc = _clip_head(sim)

    # ---- single lane-dense output slab ----------------------------------------------
    scal = (jnp.where(lane == 0, loss, 0.0)
            + jnp.where(lane == 1, img_acc, 0.0)
            + jnp.where(lane == 2, cap_acc, 0.0))
    out_ref[...] = jnp.where(row == BP - 1, scal, emb)


# ======================= wrappers =======================

_VMEM = pl.BlockSpec(memory_space=pltpu.MemorySpace.VMEM)


def clip_forward_fused(vis_feat, txt_feat, params):
    """Single pallas_call: both projections + similarity + CLIP loss + accuracies."""
    # d_in_vision + d_in_text == 128 exactly fills the lanes of one tile; one pad op.
    x_cat = jnp.pad(jnp.concatenate([vis_feat, txt_feat], axis=1).astype(jnp.float32),
                    ((0, BP - BATCH), (0, 0)))
    out = pl.pallas_call(
        _clip_fused_kernel,
        out_shape=jax.ShapeDtypeStruct((BP, DP), jnp.float32),
        in_specs=[_VMEM, _VMEM, _VMEM],
        out_specs=_VMEM,
    )(x_cat, params["w_slab"], params["gb_slab"])

    image_embed = out[:BATCH, VIS_OUT:VIS_OUT + EMBED_DIM]
    caption_embed = out[:BATCH, TXT_OUT:TXT_OUT + EMBED_DIM]
    loss = out[BP - 1, 0]
    img_acc = out[BP - 1, 1]
    cap_acc = out[BP - 1, 2]
    return loss, img_acc, cap_acc, image_embed, caption_embed


def init_params(key):
    ks = jax.random.split(key, 6)
    scale = 0.05
    v_w1 = scale * jax.random.normal(ks[0], (D_IN_VISION, EMBED_DIM), jnp.float32)
    v_w2 = scale * jax.random.normal(ks[1], (EMBED_DIM, EMBED_DIM), jnp.float32)
    t_w1 = scale * jax.random.normal(ks[2], (D_IN_TEXT, EMBED_DIM), jnp.float32)
    t_w2 = scale * jax.random.normal(ks[3], (EMBED_DIM, EMBED_DIM), jnp.float32)
    v_gamma = jnp.ones((EMBED_DIM,), jnp.float32)
    v_beta = jnp.zeros((EMBED_DIM,), jnp.float32)
    t_gamma = jnp.ones((EMBED_DIM,), jnp.float32)
    t_beta = jnp.zeros((EMBED_DIM,), jnp.float32)

    # --- packed, pre-padded kernel operands (built ONCE at init, not per forward) ---
    w1_bd = jnp.zeros((DP, DP), jnp.float32)
    w1_bd = w1_bd.at[0:D_IN_VISION, VIS_OUT:VIS_OUT + EMBED_DIM].set(v_w1)
    w1_bd = w1_bd.at[TXT_IN:TXT_IN + D_IN_TEXT, TXT_OUT:TXT_OUT + EMBED_DIM].set(t_w1)
    w2_bd = jnp.zeros((DP, DP), jnp.float32)
    w2_bd = w2_bd.at[VIS_OUT:VIS_OUT + EMBED_DIM, VIS_OUT:VIS_OUT + EMBED_DIM].set(v_w2)
    w2_bd = w2_bd.at[TXT_OUT:TXT_OUT + EMBED_DIM, TXT_OUT:TXT_OUT + EMBED_DIM].set(t_w2)
    w_slab = jnp.concatenate([w1_bd, w2_bd], axis=1).astype(jnp.bfloat16)   # (128, 256)

    gb_slab = jnp.zeros((BP, DP), jnp.float32)
    gb_slab = gb_slab.at[0, VIS_OUT:VIS_OUT + EMBED_DIM].set(v_gamma)
    gb_slab = gb_slab.at[0, TXT_OUT:TXT_OUT + EMBED_DIM].set(t_gamma)
    gb_slab = gb_slab.at[1, VIS_OUT:VIS_OUT + EMBED_DIM].set(v_beta)
    gb_slab = gb_slab.at[1, TXT_OUT:TXT_OUT + EMBED_DIM].set(t_beta)

    return {
        # frozen backbone stand-ins
        "vision_stub_w": scale * jax.random.normal(ks[4], (4, D_IN_VISION), jnp.float32),
        "text_stub_emb": scale * jax.random.normal(ks[5], (VOCAB, D_IN_TEXT), jnp.float32),
        # raw per-tower parameters (reference check only)
        "v_w1": v_w1, "v_w2": v_w2, "v_gamma": v_gamma, "v_beta": v_beta,
        "t_w1": t_w1, "t_w2": t_w2, "t_gamma": t_gamma, "t_beta": t_beta,
        # packed kernel operands
        "w_slab": w_slab, "gb_slab": gb_slab,
    }


@jax.jit
def custom_model_forward(images, input_ids, params):
    """Equivalent of CustomModel.forward(images, text) -> (loss, img_acc, cap_acc)."""
    # --- VisionEncoder.base (frozen, pretrained torchvision ResNet34) ---
    # TODO(synk): pretrained ResNet34 backbone not translated; replaced by a deterministic
    # global-average-pool + fixed-linear stub producing (B, d_in) features.
    pooled = jnp.mean(images, axis=(2, 3))                       # NCHW -> (B, C)
    vis_feat = pooled @ params["vision_stub_w"]                  # (B, D_IN_VISION)

    # --- Tokenizer + TextEncoder.base (frozen HuggingFace BERT) ---
    # TODO(synk): tokenizer + AutoModel not translated; replaced by a deterministic
    # embedding-table stub, taking the position-0 ("CLS") vector.
    txt_feat = params["text_stub_emb"][input_ids[:, 0]]          # (B, D_IN_TEXT)

    return clip_forward_fused(vis_feat, txt_feat, params)


# ======================= reference (plain JAX, f32) =======================

def _ref_projection(x, w1, w2, gamma, beta):
    e1 = x @ w1
    g = _gelu(e1)
    e2 = g @ w2
    s = e1 + e2
    mu = jnp.mean(s, axis=-1, keepdims=True)
    var = jnp.mean((s - mu) ** 2, axis=-1, keepdims=True)
    ln = (s - mu) / jnp.sqrt(var + LN_EPS) * gamma + beta
    return ln / jnp.linalg.norm(ln, axis=-1, keepdims=True)


def _ref_clip(sim):
    n = sim.shape[0]
    idx = jnp.arange(n)
    logp_r = jax.nn.log_softmax(sim, axis=1)
    logp_c = jax.nn.log_softmax(sim, axis=0)
    caption_loss = -jnp.mean(logp_r[idx, idx])
    image_loss = -jnp.mean(logp_c[idx, idx])
    loss = 0.5 * (caption_loss + image_loss)
    img_acc = jnp.mean((jnp.argmax(sim, axis=1) == idx).astype(jnp.float32))
    cap_acc = jnp.mean((jnp.argmax(sim, axis=0) == idx).astype(jnp.float32))
    return loss, img_acc, cap_acc


if __name__ == "__main__":
    key = jax.random.PRNGKey(0)
    k_img, k_tok, k_par = jax.random.split(key, 3)

    images = jax.random.normal(k_img, (BATCH, 4, 16, 16), jnp.float32)       # NCHW
    input_ids = jax.random.randint(k_tok, (BATCH, SEQ), 0, VOCAB, jnp.int32)
    params = init_params(k_par)

    loss, img_acc, cap_acc, image_embed, caption_embed = jax.block_until_ready(
        custom_model_forward(images, input_ids, params))

    # correctness check of the fused Pallas path vs plain-JAX f32 reference
    pooled = jnp.mean(images, axis=(2, 3))
    vis_feat = pooled @ params["vision_stub_w"]
    txt_feat = params["text_stub_emb"][input_ids[:, 0]]
    img_ref = _ref_projection(vis_feat, params["v_w1"], params["v_w2"],
                              params["v_gamma"], params["v_beta"])
    cap_ref = _ref_projection(txt_feat, params["t_w1"], params["t_w2"],
                              params["t_gamma"], params["t_beta"])
    sim_ref = cap_ref @ img_ref.T
    loss_ref, iacc_ref, cacc_ref = _ref_clip(sim_ref)

    # bf16 MXU operands in the kernel -> tolerance loosened from 1e-3 to 2e-2
    TOL = 2e-2
    assert jnp.allclose(image_embed, img_ref, atol=TOL, rtol=TOL)
    assert jnp.allclose(caption_embed, cap_ref, atol=TOL, rtol=TOL)
    assert jnp.allclose(loss, loss_ref, atol=TOL, rtol=TOL)
    assert jnp.allclose(img_acc, iacc_ref, atol=1e-3)
    assert jnp.allclose(cap_acc, cacc_ref, atol=1e-3)
    assert jnp.isfinite(loss) and 0.0 <= float(img_acc) <= 1.0 and 0.0 <= float(cap_acc) <= 1.0

    print("KERNEL_OK")
</pallas_src>

<mosaic_0001>
module attributes {stable_mosaic.version = 11 : i64} {
  func.func @_clip_fused_kernel(%arg0: memref<8x128xf32, #tpu.memory_space<vmem>>, %arg1: memref<128x256xbf16, #tpu.memory_space<vmem>>, %arg2: memref<8x128xf32, #tpu.memory_space<vmem>>, %arg3: memref<8x128xf32, #tpu.memory_space<vmem>>) attributes {dimension_semantics = [], scalar_prefetch = 0 : i64, scratch_operands = 0 : i64, tpu.core_type = #tpu.core_type<tc>} {
    %c0 = arith.constant 0 : index
    %c0_0 = arith.constant 0 : index
    %0 = vector.load %arg0[%c0, %c0_0] : memref<8x128xf32, #tpu.memory_space<vmem>>, vector<8x128xf32>
    %1 = arith.truncf %0 : vector<8x128xf32> to vector<8x128xbf16>
    %c0_1 = arith.constant 0 : index
    %c0_2 = arith.constant 0 : index
    %2 = vector.load %arg1[%c0_1, %c0_2] : memref<128x256xbf16, #tpu.memory_space<vmem>>, vector<128x128xbf16>
    %c0_3 = arith.constant 0 : index
    %c128 = arith.constant 128 : index
    %3 = vector.load %arg1[%c0_3, %c128] : memref<128x256xbf16, #tpu.memory_space<vmem>>, vector<128x128xbf16>
    %cst = arith.constant dense<0.000000e+00> : vector<8x128xf32>
    %4 = tpu.matmul %1, %2, %cst {dimension_numbers = #tpu.dot_dimension_numbers<[1], [0], [0], [1], [0, 0, 1, 1], [], []>} : vector<8x128xbf16>, vector<128x128xbf16>, vector<8x128xf32> -> vector<8x128xf32>
    %cst_4 = arith.constant 5.000000e-01 : f32
    %5 = vector.broadcast %cst_4 : f32 to vector<8x128xf32>
    %6 = arith.mulf %5, %4 : vector<8x128xf32>
    %cst_5 = arith.constant 4.471500e-02 : f32
    %7 = vector.broadcast %cst_5 : f32 to vector<8x128xf32>
    %8 = arith.mulf %7, %4 : vector<8x128xf32>
    %9 = arith.mulf %8, %4 : vector<8x128xf32>
    %10 = arith.mulf %9, %4 : vector<8x128xf32>
    %11 = arith.addf %4, %10 : vector<8x128xf32>
    %cst_6 = arith.constant 0.797884583 : f32
    %12 = vector.broadcast %cst_6 : f32 to vector<8x128xf32>
    %13 = arith.mulf %12, %11 : vector<8x128xf32>
    %14 = math.tanh %13 : vector<8x128xf32>
    %cst_7 = arith.constant 1.000000e+00 : f32
    %15 = vector.broadcast %cst_7 : f32 to vector<8x128xf32>
    %16 = arith.addf %15, %14 : vector<8x128xf32>
    %17 = arith.mulf %6, %16 : vector<8x128xf32>
    %18 = arith.truncf %17 : vector<8x128xf32> to vector<8x128xbf16>
    %cst_8 = arith.constant dense<0.000000e+00> : vector<8x128xf32>
    %19 = tpu.matmul %18, %3, %cst_8 {dimension_numbers = #tpu.dot_dimension_numbers<[1], [0], [0], [1], [0, 0, 1, 1], [], []>} : vector<8x128xbf16>, vector<128x128xbf16>, vector<8x128xf32> -> vector<8x128xf32>
    %20 = arith.addf %4, %19 : vector<8x128xf32>
    %c0_9 = arith.constant 0 : index
    %c0_10 = arith.constant 0 : index
    %21 = vector.load %arg2[%c0_9, %c0_10] : memref<8x128xf32, #tpu.memory_space<vmem>>, vector<8x128xf32>
    %22 = vector.extract_strided_slice %21 {offsets = [0, 0], sizes = [1, 128], strides = [1, 1]} : vector<8x128xf32> to vector<1x128xf32>
    %23 = vector.extract_strided_slice %21 {offsets = [1, 0], sizes = [1, 128], strides = [1, 1]} : vector<8x128xf32> to vector<1x128xf32>
    %24 = tpu.iota {dimensions = array<i32: 1>} : vector<8x128xi32>
    %25 = tpu.iota {dimensions = array<i32: 0>} : vector<8x128xi32>
    %c64_i32 = arith.constant 64 : i32
    %26 = vector.broadcast %c64_i32 : i32 to vector<8x128xi32>
    %27 = arith.cmpi slt, %24, %26 : vector<8x128xi32>
    %28 = arith.extui %27 : vector<8x128xi1> to vector<8x128xi32>
    %29 = arith.sitofp %28 : vector<8x128xi32> to vector<8x128xf32>
    %cst_11 = arith.constant dense<0.000000e+00> : vector<8xf32>
    %30 = vector.multi_reduction <add>, %20, %cst_11 [1] : vector<8x128xf32> to vector<8xf32>
    %31 = vector.shape_cast %30 : vector<8xf32> to vector<8x1xf32>
    %32 = arith.mulf %20, %29 : vector<8x128xf32>
    %cst_12 = arith.constant dense<0.000000e+00> : vector<8xf32>
    %33 = vector.multi_reduction <add>, %32, %cst_12 [1] : vector<8x128xf32> to vector<8xf32>
    %34 = vector.shape_cast %33 : vector<8xf32> to vector<8x1xf32>
    %35 = arith.subf %31, %34 : vector<8x1xf32>
    %36 = arith.mulf %20, %20 : vector<8x128xf32>
    %cst_13 = arith.constant dense<0.000000e+00> : vector<8xf32>
    %37 = vector.multi_reduction <add>, %36, %cst_13 [1] : vector<8x128xf32> to vector<8xf32>
    %38 = vector.shape_cast %37 : vector<8xf32> to vector<8x1xf32>
    %39 = arith.mulf %36, %29 : vector<8x128xf32>
    %cst_14 = arith.constant dense<0.000000e+00> : vector<8xf32>
    %40 = vector.multi_reduction <add>, %39, %cst_14 [1] : vector<8x128xf32> to vector<8xf32>
    %41 = vector.shape_cast %40 : vector<8xf32> to vector<8x1xf32>
    %42 = arith.subf %38, %41 : vector<8x1xf32>
    %cst_15 = arith.constant 3.125000e-02 : f32
    %43 = vector.broadcast %cst_15 : f32 to vector<8x1xf32>
    %44 = arith.mulf %34, %43 : vector<8x1xf32>
    %cst_16 = arith.constant 3.125000e-02 : f32
    %45 = vector.broadcast %cst_16 : f32 to vector<8x1xf32>
    %46 = arith.mulf %35, %45 : vector<8x1xf32>
    %cst_17 = arith.constant 3.125000e-02 : f32
    %47 = vector.broadcast %cst_17 : f32 to vector<8x1xf32>
    %48 = arith.mulf %41, %47 : vector<8x1xf32>
    %49 = arith.mulf %44, %44 : vector<8x1xf32>
    %50 = arith.subf %48, %49 : vector<8x1xf32>
    %cst_18 = arith.constant 9.99999974E-6 : f32
    %51 = vector.broadcast %cst_18 : f32 to vector<8x1xf32>
    %52 = arith.addf %50, %51 : vector<8x1xf32>
    %53 = math.rsqrt %52 : vector<8x1xf32>
    %cst_19 = arith.constant 3.125000e-02 : f32
    %54 = vector.broadcast %cst_19 : f32 to vector<8x1xf32>
    %55 = arith.mulf %42, %54 : vector<8x1xf32>
    %56 = arith.mulf %46, %46 : vector<8x1xf32>
    %57 = arith.subf %55, %56 : vector<8x1xf32>
    %cst_20 = arith.constant 9.99999974E-6 : f32
    %58 = vector.broadcast %cst_20 : f32 to vector<8x1xf32>
    %59 = arith.addf %57, %58 : vector<8x1xf32>
    %60 = math.rsqrt %59 : vector<8x1xf32>
    %61 = vector.shape_cast %44 : vector<8x1xf32> to vector<8x1xf32>
    %62 = vector.broadcast %61 : vector<8x1xf32> to vector<8x128xf32>
    %63 = vector.shape_cast %46 : vector<8x1xf32> to vector<8x1xf32>
    %64 = vector.broadcast %63 : vector<8x1xf32> to vector<8x128xf32>
    %65 = arith.select %27, %62, %64 : vector<8x128xi1>, vector<8x128xf32>
    %66 = arith.subf %20, %65 : vector<8x128xf32>
    %67 = vector.shape_cast %53 : vector<8x1xf32> to vector<8x1xf32>
    %68 = vector.broadcast %67 : vector<8x1xf32> to vector<8x128xf32>
    %69 = vector.shape_cast %60 : vector<8x1xf32> to vector<8x1xf32>
    %70 = vector.broadcast %69 : vector<8x1xf32> to vector<8x128xf32>
    %71 = arith.select %27, %68, %70 : vector<8x128xi1>, vector<8x128xf32>
    %72 = arith.mulf %66, %71 : vector<8x128xf32>
    %73 = vector.broadcast %22 : vector<1x128xf32> to vector<8x128xf32>
    %74 = arith.mulf %72, %73 : vector<8x128xf32>
    %75 = vector.broadcast %23 : vector<1x128xf32> to vector<8x128xf32>
    %76 = arith.addf %74, %75 : vector<8x128xf32>
    %77 = arith.mulf %76, %76 : vector<8x128xf32>
    %cst_21 = arith.constant dense<0.000000e+00> : vector<8xf32>
    %78 = vector.multi_reduction <add>, %77, %cst_21 [1] : vector<8x128xf32> to vector<8xf32>
    %79 = vector.shape_cast %78 : vector<8xf32> to vector<8x1xf32>
    %80 = arith.mulf %77, %29 : vector<8x128xf32>
    %cst_22 = arith.constant dense<0.000000e+00> : vector<8xf32>
    %81 = vector.multi_reduction <add>, %80, %cst_22 [1] : vector<8x128xf32> to vector<8xf32>
    %82 = vector.shape_cast %81 : vector<8xf32> to vector<8x1xf32>
    %83 = arith.subf %79, %82 : vector<8x1xf32>
    %84 = tpu.iota {dimensions = array<i32: 0>} : vector<8x1xi32>
    %c2_i32 = arith.constant 2 : i32
    %85 = vector.broadcast %c2_i32 : i32 to vector<8x1xi32>
    %86 = arith.cmpi sge, %84, %85 : vector<8x1xi32>
    %87 = arith.extui %86 : vector<8x1xi1> to vector<8x1xi32>
    %88 = arith.sitofp %87 : vector<8x1xi32> to vector<8x1xf32>
    %89 = arith.addf %82, %88 : vector<8x1xf32>
    %90 = math.rsqrt %89 : vector<8x1xf32>
    %91 = arith.addf %83, %88 : vector<8x1xf32>
    %92 = math.rsqrt %91 : vector<8x1xf32>
    %93 = vector.shape_cast %90 : vector<8x1xf32> to vector<8x1xf32>
    %94 = vector.broadcast %93 : vector<8x1xf32> to vector<8x128xf32>
    %95 = vector.shape_cast %92 : vector<8x1xf32> to vector<8x1xf32>
    %96 = vector.broadcast %95 : vector<8x1xf32> to vector<8x128xf32>
    %97 = arith.select %27, %94, %96 : vector<8x128xi1>, vector<8x128xf32>
    %98 = arith.mulf %76, %97 : vector<8x128xf32>
    %c64_i32_23 = arith.constant 64 : i32
    %99 = tpu.dynamic_rotate %98 by %c64_i32_23 dim 1 : vector<8x128xf32>, i32 -> vector<8x128xf32>
    %100 = arith.mulf %98, %29 : vector<8x128xf32>
    %cst_24 = arith.constant dense<0.000000e+00> : vector<8x8xf32>
    %101 = tpu.matmul %99, %100, %cst_24 {dimension_numbers = #tpu.dot_dimension_numbers<[1], [1], [0], [0], [0, 0, 1, 0], [], []>} : vector<8x128xf32>, vector<8x128xf32>, vector<8x8xf32> -> vector<8x8xf32>
    %102 = tpu.iota {dimensions = array<i32: 0>} : vector<8x8xi32>
    %103 = tpu.iota {dimensions = array<i32: 1>} : vector<8x8xi32>
    %c2_i32_25 = arith.constant 2 : i32
    %104 = vector.broadcast %c2_i32_25 : i32 to vector<8x8xi32>
    %105 = arith.cmpi slt, %102, %104 : vector<8x8xi32>
    %c2_i32_26 = arith.constant 2 : i32
    %106 = vector.broadcast %c2_i32_26 : i32 to vector<8x8xi32>
    %107 = arith.cmpi slt, %103, %106 : vector<8x8xi32>
    %108 = arith.andi %105, %107 : vector<8x8xi1>
    %109 = arith.cmpi eq, %102, %103 : vector<8x8xi32>
    %110 = arith.andi %109, %108 : vector<8x8xi1>
    %111 = arith.extui %110 : vector<8x8xi1> to vector<8x8xi32>
    %112 = arith.sitofp %111 : vector<8x8xi32> to vector<8x8xf32>
    %cst_27 = arith.constant -1.000000e+30 : f32
    %113 = vector.broadcast %cst_27 : f32 to vector<8x8xf32>
    %114 = arith.select %108, %101, %113 : vector<8x8xi1>, vector<8x8xf32>
    %cst_28 = arith.constant dense<0xFF800000> : vector<8xf32>
    %115 = vector.multi_reduction <maximumf>, %114, %cst_28 [1] : vector<8x8xf32> to vector<8xf32>
    %116 = vector.shape_cast %115 : vector<8xf32> to vector<8x1xf32>
    %117 = vector.broadcast %116 : vector<8x1xf32> to vector<8x8xf32>
    %118 = arith.subf %114, %117 : vector<8x8xf32>
    %119 = math.exp %118 : vector<8x8xf32>
    %cst_29 = arith.constant dense<0.000000e+00> : vector<8xf32>
    %120 = vector.multi_reduction <add>, %119, %cst_29 [1] : vector<8x8xf32> to vector<8xf32>
    %121 = vector.shape_cast %120 : vector<8xf32> to vector<8x1xf32>
    %122 = math.log %121 : vector<8x1xf32>
    %123 = arith.addf %122, %116 : vector<8x1xf32>
    %124 = vector.broadcast %123 : vector<8x1xf32> to vector<8x8xf32>
    %125 = arith.subf %114, %124 : vector<8x8xf32>
    %126 = arith.mulf %112, %125 : vector<8x8xf32>
    %cst_30 = arith.constant dense<0.000000e+00> : vector<8xf32>
    %127 = vector.multi_reduction <add>, %126, %cst_30 [1] : vector<8x8xf32> to vector<8xf32>
    %128 = vector.shape_cast %127 : vector<8xf32> to vector<8x1xf32>
    %cst_31 = arith.constant dense<0.000000e+00> : vector<1xf32>
    %129 = vector.multi_reduction <add>, %128, %cst_31 [0] : vector<8x1xf32> to vector<1xf32>
    %130 = vector.shape_cast %129 : vector<1xf32> to vector<1x1xf32>
    %cst_32 = arith.constant 0.000000e+00 : f32
    %131 = vector.broadcast %cst_32 : f32 to vector<1x1xf32>
    %132 = arith.subf %131, %130 : vector<1x1xf32>
    %cst_33 = arith.constant 5.000000e-01 : f32
    %133 = vector.broadcast %cst_33 : f32 to vector<1x1xf32>
    %134 = arith.mulf %132, %133 : vector<1x1xf32>
    %cst_34 = arith.constant dense<0xFF800000> : vector<8xf32>
    %135 = vector.multi_reduction <maximumf>, %114, %cst_34 [0] : vector<8x8xf32> to vector<8xf32>
    %136 = vector.shape_cast %135 : vector<8xf32> to vector<1x8xf32>
    %137 = vector.broadcast %136 : vector<1x8xf32> to vector<8x8xf32>
    %138 = arith.subf %114, %137 : vector<8x8xf32>
    %139 = math.exp %138 : vector<8x8xf32>
    %cst_35 = arith.constant dense<0.000000e+00> : vector<8xf32>
    %140 = vector.multi_reduction <add>, %139, %cst_35 [0] : vector<8x8xf32> to vector<8xf32>
    %141 = vector.shape_cast %140 : vector<8xf32> to vector<1x8xf32>
    %142 = math.log %141 : vector<1x8xf32>
    %143 = arith.addf %142, %136 : vector<1x8xf32>
    %144 = vector.broadcast %143 : vector<1x8xf32> to vector<8x8xf32>
    %145 = arith.subf %114, %144 : vector<8x8xf32>
    %146 = arith.mulf %112, %145 : vector<8x8xf32>
    %cst_36 = arith.constant dense<0.000000e+00> : vector<8xf32>
    %147 = vector.multi_reduction <add>, %146, %cst_36 [1] : vector<8x8xf32> to vector<8xf32>
    %148 = vector.shape_cast %147 : vector<8xf32> to vector<8x1xf32>
    %cst_37 = arith.constant dense<0.000000e+00> : vector<1xf32>
    %149 = vector.multi_reduction <add>, %148, %cst_37 [0] : vector<8x1xf32> to vector<1xf32>
    %150 = vector.shape_cast %149 : vector<1xf32> to vector<1x1xf32>
    %cst_38 = arith.constant 0.000000e+00 : f32
    %151 = vector.broadcast %cst_38 : f32 to vector<1x1xf32>
    %152 = arith.subf %151, %150 : vector<1x1xf32>
    %cst_39 = arith.constant 5.000000e-01 : f32
    %153 = vector.broadcast %cst_39 : f32 to vector<1x1xf32>
    %154 = arith.mulf %152, %153 : vector<1x1xf32>
    %155 = arith.addf %134, %154 : vector<1x1xf32>
    %cst_40 = arith.constant 5.000000e-01 : f32
    %156 = vector.broadcast %cst_40 : f32 to vector<1x1xf32>
    %157 = arith.mulf %156, %155 : vector<1x1xf32>
    %158 = arith.mulf %101, %112 : vector<8x8xf32>
    %cst_41 = arith.constant dense<0.000000e+00> : vector<8xf32>
    %159 = vector.multi_reduction <add>, %158, %cst_41 [1] : vector<8x8xf32> to vector<8xf32>
    %160 = vector.shape_cast %159 : vector<8xf32> to vector<8x1xf32>
    %161 = arith.mulf %101, %112 : vector<8x8xf32>
    %cst_42 = arith.constant dense<0.000000e+00> : vector<8xf32>
    %162 = vector.multi_reduction <add>, %161, %cst_42 [0] : vector<8x8xf32> to vector<8xf32>
    %163 = vector.shape_cast %162 : vector<8xf32> to vector<1x8xf32>
    %164 = tpu.iota {dimensions = array<i32: 0>} : vector<8x1xi32>
    %c2_i32_43 = arith.constant 2 : i32
    %165 = vector.broadcast %c2_i32_43 : i32 to vector<8x1xi32>
    %166 = arith.cmpi slt, %164, %165 : vector<8x1xi32>
    %167 = tpu.iota {dimensions = array<i32: 1>} : vector<1x8xi32>
    %c2_i32_44 = arith.constant 2 : i32
    %168 = vector.broadcast %c2_i32_44 : i32 to vector<1x8xi32>
    %169 = arith.cmpi slt, %167, %168 : vector<1x8xi32>
    %cst_45 = arith.constant dense<0xFF800000> : vector<8xf32>
    %170 = vector.multi_reduction <maximumf>, %114, %cst_45 [1] : vector<8x8xf32> to vector<8xf32>
    %171 = vector.shape_cast %170 : vector<8xf32> to vector<8x1xf32>
    %172 = arith.cmpf oge, %160, %171 : vector<8x1xf32>
    %173 = arith.andi %172, %166 : vector<8x1xi1>
    %174 = arith.extui %173 : vector<8x1xi1> to vector<8x1xi32>
    %175 = arith.sitofp %174 : vector<8x1xi32> to vector<8x1xf32>
    %cst_46 = arith.constant dense<0.000000e+00> : vector<8xf32>
    %176 = vector.multi_reduction <add>, %175, %cst_46 [1] : vector<8x1xf32> to vector<8xf32>
    %177 = vector.shape_cast %176 : vector<8xf32> to vector<8x1xf32>
    %cst_47 = arith.constant dense<0.000000e+00> : vector<1xf32>
    %178 = vector.multi_reduction <add>, %177, %cst_47 [0] : vector<8x1xf32> to vector<1xf32>
    %179 = vector.shape_cast %178 : vector<1xf32> to vector<1x1xf32>
    %cst_48 = arith.constant 5.000000e-01 : f32
    %180 = vector.broadcast %cst_48 : f32 to vector<1x1xf32>
    %181 = arith.mulf %179, %180 : vector<1x1xf32>
    %cst_49 = arith.constant dense<0xFF800000> : vector<8xf32>
    %182 = vector.multi_reduction <maximumf>, %114, %cst_49 [0] : vector<8x8xf32> to vector<8xf32>
    %183 = vector.shape_cast %182 : vector<8xf32> to vector<1x8xf32>
    %184 = arith.cmpf oge, %163, %183 : vector<1x8xf32>
    %185 = arith.andi %184, %169 : vector<1x8xi1>
    %186 = arith.extui %185 : vector<1x8xi1> to vector<1x8xi32>
    %187 = arith.sitofp %186 : vector<1x8xi32> to vector<1x8xf32>
    %cst_50 = arith.constant dense<0.000000e+00> : vector<1xf32>
    %188 = vector.multi_reduction <add>, %187, %cst_50 [1] : vector<1x8xf32> to vector<1xf32>
    %189 = vector.shape_cast %188 : vector<1xf32> to vector<1x1xf32>
    %cst_51 = arith.constant dense<0.000000e+00> : vector<1xf32>
    %190 = vector.multi_reduction <add>, %189, %cst_51 [0] : vector<1x1xf32> to vector<1xf32>
    %191 = vector.shape_cast %190 : vector<1xf32> to vector<1x1xf32>
    %cst_52 = arith.constant 5.000000e-01 : f32
    %192 = vector.broadcast %cst_52 : f32 to vector<1x1xf32>
    %193 = arith.mulf %191, %192 : vector<1x1xf32>
    %c0_i32 = arith.constant 0 : i32
    %194 = vector.broadcast %c0_i32 : i32 to vector<8x128xi32>
    %195 = arith.cmpi eq, %24, %194 : vector<8x128xi32>
    %cst_53 = arith.constant 0.000000e+00 : f32
    %196 = vector.shape_cast %157 : vector<1x1xf32> to vector<1x1xf32>
    %197 = vector.broadcast %196 : vector<1x1xf32> to vector<8x128xf32>
    %198 = vector.broadcast %cst_53 : f32 to vector<8x128xf32>
    %199 = arith.select %195, %197, %198 : vector<8x128xi1>, vector<8x128xf32>
    %c1_i32 = arith.constant 1 : i32
    %200 = vector.broadcast %c1_i32 : i32 to vector<8x128xi32>
    %201 = arith.cmpi eq, %24, %200 : vector<8x128xi32>
    %cst_54 = arith.constant 0.000000e+00 : f32
    %202 = vector.shape_cast %181 : vector<1x1xf32> to vector<1x1xf32>
    %203 = vector.broadcast %202 : vector<1x1xf32> to vector<8x128xf32>
    %204 = vector.broadcast %cst_54 : f32 to vector<8x128xf32>
    %205 = arith.select %201, %203, %204 : vector<8x128xi1>, vector<8x128xf32>
    %206 = arith.addf %199, %205 : vector<8x128xf32>
    %c2_i32_55 = arith.constant 2 : i32
    %207 = vector.broadcast %c2_i32_55 : i32 to vector<8x128xi32>
    %208 = arith.cmpi eq, %24, %207 : vector<8x128xi32>
    %cst_56 = arith.constant 0.000000e+00 : f32
    %209 = vector.shape_cast %193 : vector<1x1xf32> to vector<1x1xf32>
    %210 = vector.broadcast %209 : vector<1x1xf32> to vector<8x128xf32>
    %211 = vector.broadcast %cst_56 : f32 to vector<8x128xf32>
    %212 = arith.select %208, %210, %211 : vector<8x128xi1>, vector<8x128xf32>
    %213 = arith.addf %206, %212 : vector<8x128xf32>
    %c7_i32 = arith.constant 7 : i32
    %214 = vector.broadcast %c7_i32 : i32 to vector<8x128xi32>
    %215 = arith.cmpi eq, %25, %214 : vector<8x128xi32>
    %216 = arith.select %215, %213, %98 : vector<8x128xi1>, vector<8x128xf32>
    %c0_57 = arith.constant 0 : index
    %c0_58 = arith.constant 0 : index
    %217 = vector.load %arg3[%c0_57, %c0_58] : memref<8x128xf32, #tpu.memory_space<vmem>>, vector<8x128xf32>
    tpu.vector_store %arg3[%c0_57, %c0_58], %216 {strides = array<i32>} : memref<8x128xf32, #tpu.memory_space<vmem>>, vector<8x128xf32>,
    return
  }
}

</mosaic_0001>

<llo_original>
// kernel: custom_model_forward.1
$region0: #{custom_model_forward.1}
  #allocation0 [shape = 'u32[]', space=smem, size = 0x4, offset = 0x4, fixed_abs, tag = 'smem constant byte address 0x4 - core index']
  #allocation1 [shape = 'u32[144,128]{1,0:T(1,128)}', space=vmem, size = 0x12000, scoped, tag = 'internal scratch']
  %s0 = inlined_call_operand.vmem [shape: f32[8,128], index: 0, kind: input, shape index: {}]
  %s1 = inlined_call_operand.vmem [shape: bf16[128,256], index: 1, kind: input, shape index: {}]
  %s2 = inlined_call_operand.vmem [shape: f32[8,128], index: 2, kind: input, shape index: {}]
  %s3 = inlined_call_operand.vmem [shape: f32[8,128], index: 3, kind: output, shape index: {}]
  %s4 = sld [smem:[#allocation0]]
  $region22: #{custom_model_forward.1} parent=0
    _
  %s6 = ssub.s32 1, %s4
  %s7 = scalar_select 0, %s6, %s4
  // Predicated region
  $region2: #{custom_model_forward.1} parent=0 // pred_check
    _
  $region3: #{custom_model_forward.1} parent=0 // pred_check_branch
    %9 = sbr.rel (0) target = $region5
  $region4: #{custom_model_forward.1} parent=0 // pred_region
    _
  $region5: #{custom_model_forward.1} parent=0 // pred_fallthru
    _
  // Predicated region
  $region6: #{custom_model_forward.1} parent=0 // pred_check
    _
  $region7: #{custom_model_forward.1} parent=0 // pred_check_branch
    %11 = sbr.rel (0) target = $region9
  $region8: #{custom_model_forward.1} parent=0 // pred_region
    _
  $region9: #{custom_model_forward.1} parent=0 // pred_fallthru
    _
  // Predicated region
  $region10: #{custom_model_forward.1} parent=0 // pred_check
    _
  $region11: #{custom_model_forward.1} parent=0 // pred_check_branch
    %13 = sbr.rel (0) target = $region13
  $region12: #{custom_model_forward.1} parent=0 // pred_region
    _
  $region13: #{custom_model_forward.1} parent=0 // pred_fallthru
    _
  %v15 = vld [vmem:[%s0] sm:$0xff]
  %v16 = vpack.c.bf16 %v15, %v15
  %v17 = vld [vmem:[%s1] sm:$0xf]
  %v18 = vld [vmem:[%s1 + $0x8] sm:$0xf]
  %v19 = vld [vmem:[%s1 + $0x10] sm:$0xf]
  %v20 = vld [vmem:[%s1 + $0x18] sm:$0xf]
  %v21 = vld [vmem:[%s1 + $0x20] sm:$0xf]
  %v22 = vld [vmem:[%s1 + $0x28] sm:$0xf]
  %v23 = vld [vmem:[%s1 + $0x30] sm:$0xf]
  %v24 = vld [vmem:[%s1 + $0x38] sm:$0xf]
  %v25 = vld [vmem:[%s1 + $0x40] sm:$0xf]
  %v26 = vld [vmem:[%s1 + $0x48] sm:$0xf]
  %v27 = vld [vmem:[%s1 + $0x50] sm:$0xf]
  %v28 = vld [vmem:[%s1 + $0x58] sm:$0xf]
  %v29 = vld [vmem:[%s1 + $0x60] sm:$0xf]
  %v30 = vld [vmem:[%s1 + $0x68] sm:$0xf]
  %v31 = vld [vmem:[%s1 + $0x70] sm:$0xf]
  %v32 = vld [vmem:[%s1 + $0x78] sm:$0xf]
  %v33 = vld [vmem:[%s1 + $0x4] sm:$0xf]
  %v34 = vld [vmem:[%s1 + $0xc] sm:$0xf]
  %v35 = vld [vmem:[%s1 + $0x14] sm:$0xf]
  %v36 = vld [vmem:[%s1 + $0x1c] sm:$0xf]
  %v37 = vld [vmem:[%s1 + $0x24] sm:$0xf]
  %v38 = vld [vmem:[%s1 + $0x2c] sm:$0xf]
  %v39 = vld [vmem:[%s1 + $0x34] sm:$0xf]
  %v40 = vld [vmem:[%s1 + $0x3c] sm:$0xf]
  %v41 = vld [vmem:[%s1 + $0x44] sm:$0xf]
  %v42 = vld [vmem:[%s1 + $0x4c] sm:$0xf]
  %v43 = vld [vmem:[%s1 + $0x54] sm:$0xf]
  %v44 = vld [vmem:[%s1 + $0x5c] sm:$0xf]
  %v45 = vld [vmem:[%s1 + $0x64] sm:$0xf]
  %v46 = vld [vmem:[%s1 + $0x6c] sm:$0xf]
  %v47 = vld [vmem:[%s1 + $0x74] sm:$0xf]
  %v48 = vld [vmem:[%s1 + $0x7c] sm:$0xf]
  %v65 = vunpack.c.l.b16 %v17
  %v66 = vunpack.c.l.b16 %v18
  %v67 = vunpack.c.l.b16 %v19
  %v68 = vunpack.c.l.b16 %v20
  %v69 = vunpack.c.l.b16 %v21
  %v70 = vunpack.c.l.b16 %v22
  %v71 = vunpack.c.l.b16 %v23
  %v72 = vunpack.c.l.b16 %v24
  %v73 = vunpack.c.l.b16 %v25
  %v74 = vunpack.c.l.b16 %v26
  %v75 = vunpack.c.l.b16 %v27
  %v76 = vunpack.c.l.b16 %v28
  %v77 = vunpack.c.l.b16 %v29
  %v78 = vunpack.c.l.b16 %v30
  %v79 = vunpack.c.l.b16 %v31
  %v80 = vunpack.c.l.b16 %v32
  %v81 = vpack.c.b16 %v66, %v65
  %v82 = vpack.c.b16 %v68, %v67
  %v83 = vpack.c.b16 %v70, %v69
  %v84 = vpack.c.b16 %v72, %v71
  %v85 = vpack.c.b16 %v74, %v73
  %v86 = vpack.c.b16 %v76, %v75
  %v87 = vpack.c.b16 %v78, %v77
  %v88 = vpack.c.b16 %v80, %v79
  %97 = vmatprep.subr.bf16.mxu0 0
  %98 = vmatpush1.bf16.msra.mxu0 %v81
  %99 = vmatprep.subr.bf16.mxu0 0
  %100 = vmatpush1.bf16.msra.mxu0 %v82
  %101 = vmatprep.subr.bf16.mxu0 0
  %102 = vmatpush1.bf16.msra.mxu0 %v83
  %103 = vmatprep.subr.bf16.mxu0 0
  %104 = vmatpush1.bf16.msra.mxu0 %v84
  %105 = vmatprep.subr.bf16.mxu0 0
  %106 = vmatpush1.bf16.msra.mxu0 %v85
  %107 = vmatprep.subr.bf16.mxu0 0
  %108 = vmatpush1.bf16.msra.mxu0 %v86
  %109 = vmatprep.subr.bf16.mxu0 0
  %110 = vmatpush1.bf16.msra.mxu0 %v87
  %111 = vmatprep.subr.bf16.mxu0 0
  %112 = vmatpush1.bf16.msra.mxu0 %v88
  %113 = vmatprep.subr.bf16.mxu0 0
  %114 = vmatpush1.bf16.msra.mxu0 0
  %115 = vmatprep.subr.bf16.mxu0 0
  %116 = vmatpush1.bf16.msra.mxu0 0
  %117 = vmatprep.subr.bf16.mxu0 0
  %118 = vmatpush1.bf16.msra.mxu0 0
  %119 = vmatprep.subr.bf16.mxu0 0
  %120 = vmatpush1.bf16.msra.mxu0 0
  %121 = vmatprep.subr.bf16.mxu0 0
  %122 = vmatpush1.bf16.msra.mxu0 0
  %123 = vmatprep.subr.bf16.mxu0 0
  %124 = vmatpush1.bf16.msra.mxu0 0
  %125 = vmatprep.subr.bf16.mxu0 0
  %126 = vmatpush1.bf16.msra.mxu0 0
  %127 = vmatprep.subr.bf16.mxu0 0
  %128 = vmatpush1.bf16.msra.mxu0 0
  %129 = vmatprep.mubr.bf16.mxu0 0
  %130 = vmatmul.mubr.bf16.gmra.mrb[0].mxu0 %v16
  %v131 = vpop.f32.mrb[0].mxu0
  %v132 = vadd.f32 0.0, %v131
  %v133 = vpop.f32.mrb[0].mxu0
  %v134 = vpop.f32.mrb[0].mxu0
  %v135 = vpop.f32.mrb[0].mxu0
  %136 = vdwg.mxu0
  %v137 = vmul.f32 %v132, 0.5
  %v138 = vmul.f32 %v132, 0.044715
  %v139 = vmul.f32 %v138, %v132
  %v140 = vmul.f32 %v139, %v132
  %v141 = vadd.f32 %v132, %v140
  %v142 = vmul.f32 %v141, 0.7978846
  %v143 = vtanh.pop %v142
  %v144 = vadd.f32 %v143, 1.0
  %v145 = vmul.f32 %v137, %v144
  %v146 = vpack.c.bf16 %v145, %v145
  %v163 = vunpack.c.l.b16 %v33
  %v164 = vunpack.c.l.b16 %v34
  %v165 = vunpack.c.l.b16 %v35
  %v166 = vunpack.c.l.b16 %v36
  %v167 = vunpack.c.l.b16 %v37
  %v168 = vunpack.c.l.b16 %v38
  %v169 = vunpack.c.l.b16 %v39
  %v170 = vunpack.c.l.b16 %v40
  %v171 = vunpack.c.l.b16 %v41
  %v172 = vunpack.c.l.b16 %v42
  %v173 = vunpack.c.l.b16 %v43
  %v174 = vunpack.c.l.b16 %v44
  %v175 = vunpack.c.l.b16 %v45
  %v176 = vunpack.c.l.b16 %v46
  %v177 = vunpack.c.l.b16 %v47
  %v178 = vunpack.c.l.b16 %v48
  %v179 = vpack.c.b16 %v164, %v163
  %v180 = vpack.c.b16 %v166, %v165
  %v181 = vpack.c.b16 %v168, %v167
  %v182 = vpack.c.b16 %v170, %v169
  %v183 = vpack.c.b16 %v172, %v171
  %v184 = vpack.c.b16 %v174, %v173
  %v185 = vpack.c.b16 %v176, %v175
  %v186 = vpack.c.b16 %v178, %v177
  %195 = vmatprep.subr.bf16.mxu0 0
  %196 = vmatpush1.bf16.msra.mxu0 %v179
  %197 = vmatprep.subr.bf16.mxu0 0
  %198 = vmatpush1.bf16.msra.mxu0 %v180
  %199 = vmatprep.subr.bf16.mxu0 0
  %200 = vmatpush1.bf16.msra.mxu0 %v181
  %201 = vmatprep.subr.bf16.mxu0 0
  %202 = vmatpush1.bf16.msra.mxu0 %v182
  %203 = vmatprep.subr.bf16.mxu0 0
  %204 = vmatpush1.bf16.msra.mxu0 %v183
  %205 = vmatprep.subr.bf16.mxu0 0
  %206 = vmatpush1.bf16.msra.mxu0 %v184
  %207 = vmatprep.subr.bf16.mxu0 0
  %208 = vmatpush1.bf16.msra.mxu0 %v185
  %209 = vmatprep.subr.bf16.mxu0 0
  %210 = vmatpush1.bf16.msra.mxu0 %v186
  %211 = vmatprep.subr.bf16.mxu0 0
  %212 = vmatpush1.bf16.msra.mxu0 0
  %213 = vmatprep.subr.bf16.mxu0 0
  %214 = vmatpush1.bf16.msra.mxu0 0
  %215 = vmatprep.subr.bf16.mxu0 0
  %216 = vmatpush1.bf16.msra.mxu0 0
  %217 = vmatprep.subr.bf16.mxu0 0
  %218 = vmatpush1.bf16.msra.mxu0 0
  %219 = vmatprep.subr.bf16.mxu0 0
  %220 = vmatpush1.bf16.msra.mxu0 0
  %221 = vmatprep.subr.bf16.mxu0 0
  %222 = vmatpush1.bf16.msra.mxu0 0
  %223 = vmatprep.subr.bf16.mxu0 0
  %224 = vmatpush1.bf16.msra.mxu0 0
  %225 = vmatprep.subr.bf16.mxu0 0
  %226 = vmatpush1.bf16.msra.mxu0 0
  %227 = vmatprep.mubr.bf16.mxu0 0
  %228 = vmatmul.mubr.bf16.gmra.mrb[0].mxu0 %v146
  %v229 = vpop.f32.mrb[0].mxu0
  %v230 = vadd.f32 0.0, %v229
  %v231 = vpop.f32.mrb[0].mxu0
  %v232 = vpop.f32.mrb[0].mxu0
  %v233 = vpop.f32.mrb[0].mxu0
  %234 = vdwg.mxu0
  %v235 = vadd.f32 %v132, %v230
  %v236 = vld [vmem:[%s2] sm:$0xff]
  %v237 = vlaneseq
  %v238 = vand.u32 %v237, 127
  %v239 = vlaneseq
  %v240 = vshrl.u32 %v239, 7
  %vm241 = vcmp.lt.s32.totalorder %v238, 64
  %v242 = vsel %vm241, 1, 0
  %v243 = vcvt.s32.f32 %v242
  %244 = vadd.xlane.f32.xlu0 %v235
  %v245 = vpop.xlane.xlu0 %244
  %v246 = vmul.f32 %v235, %v243
  %247 = vadd.xlane.f32.xlu0 %v246
  %v248 = vpop.xlane.xlu0 %247
  %v249 = vsub.f32 %v245, %v248
  %v250 = vmul.f32 %v235, %v235
  %251 = vadd.xlane.f32.xlu0 %v250
  %v252 = vpop.xlane.xlu0 %251
  %v253 = vmul.f32 %v250, %v243
  %254 = vadd.xlane.f32.xlu0 %v253
  %v255 = vpop.xlane.xlu0 %254
  %v256 = vsub.f32 %v252, %v255
  %v257 = vmul.f32 %v248, 0.03125
  %v258 = vmul.f32 %v249, 0.03125
  %v259 = vmul.f32 %v255, 0.03125
  %v260 = vmul.f32 %v257, %v257
  %v261 = vsub.f32 %v259, %v260
  %v262 = vadd.f32 %v261, 1e-05
  %v263 = vrsqrt.pop %v262
  %v264 = vmul.f32 %v256, 0.03125
  %v265 = vmul.f32 %v258, %v258
  %v266 = vsub.f32 %v264, %v265
  %v267 = vadd.f32 %v266, 1e-05
  %v268 = vrsqrt.pop %v267
  %v269 = vsel %vm241, %v257, %v258
  %v270 = vsub.f32 %v235, %v269
  %v271 = vsel %vm241, %v263, %v268
  %v272 = vmul.f32 %v270, %v271
  %v273 = vlaneseq
  %v274 = vshrl.u32 %v273, 7
  %v275 = vsub.s32 0, %v274
  %v276 = vrot.slane %v236, %v275
  %v277 = vmul.f32 %v272, %v276
  %v278 = vlaneseq
  %v279 = vshrl.u32 %v278, 7
  %v280 = vsub.s32 1, %v279
  %v281 = vrot.slane %v236, %v280
  %v282 = vadd.f32 %v277, %v281
  %v283 = vmul.f32 %v282, %v282
  %284 = vadd.xlane.f32.xlu0 %v283
  %v285 = vpop.xlane.xlu0 %284
  %v286 = vmul.f32 %v283, %v243
  %287 = vadd.xlane.f32.xlu0 %v286
  %v288 = vpop.xlane.xlu0 %287
  %v289 = vsub.f32 %v285, %v288
  %vm290 = vcmp.ge.s32.totalorder %v240, 2
  %v291 = vsel %vm290, 1, 0
  %v292 = vcvt.s32.f32 %v291
  %v293 = vadd.f32 %v288, %v292
  %v294 = vrsqrt.pop %v293
  %v295 = vadd.f32 %v289, %v292
  %v296 = vrsqrt.pop %v295
  %v297 = vsel %vm241, %v294, %v296
  %v298 = vmul.f32 %v282, %v297
  %299 = vrot.lane.b32.xlu0 %v298, 64
  %v300 = vpop.permute.xlu0 %299
  %v301 = vmul.f32 %v298, %v243
  %302 = vmatprep.subr.mxu0 0.0
  %303 = vmatpush1.xpose.msra.mxu0 %v301
  %304 = vmatprep.subr.mxu0 0.0
  %305 = vmatpush1.xpose.msra.mxu0 0.0
  %306 = vmatprep.subr.mxu0 0.0
  %307 = vmatpush1.xpose.msra.mxu0 0.0
  %308 = vmatprep.subr.mxu0 0.0
  %309 = vmatpush1.xpose.msra.mxu0 0.0
  %310 = vmatprep.subr.mxu0 0.0
  %311 = vmatpush1.xpose.msra.mxu0 0.0
  %312 = vmatprep.subr.mxu0 0.0
  %313 = vmatpush1.xpose.msra.mxu0 0.0
  %314 = vmatprep.subr.mxu0 0.0
  %315 = vmatpush1.xpose.msra.mxu0 0.0
  %316 = vmatprep.subr.mxu0 0.0
  %317 = vmatpush1.xpose.msra.mxu0 0.0
  %318 = vmatprep.subr.mxu0 0.0
  %319 = vmatpush1.xpose.msra.mxu0 0.0
  %320 = vmatprep.subr.mxu0 0.0
  %321 = vmatpush1.xpose.msra.mxu0 0.0
  %322 = vmatprep.subr.mxu0 0.0
  %323 = vmatpush1.xpose.msra.mxu0 0.0
  %324 = vmatprep.subr.mxu0 0.0
  %325 = vmatpush1.xpose.msra.mxu0 0.0
  %326 = vmatprep.subr.mxu0 0.0
  %327 = vmatpush1.xpose.msra.mxu0 0.0
  %328 = vmatprep.subr.mxu0 0.0
  %329 = vmatpush1.xpose.msra.mxu0 0.0
  %330 = vmatprep.subr.mxu0 0.0
  %331 = vmatpush1.xpose.msra.mxu0 0.0
  %332 = vmatprep.subr.mxu0 0.0
  %333 = vmatpush1.xpose.msra.mxu0 0.0
  %334 = vmatprep.subr.mxu0 0.0
  %335 = vmatpush1.xpose.msra.mxu0 0.0
  %336 = vmatprep.subr.mxu0 0.0
  %337 = vmatpush1.xpose.msra.mxu0 0.0
  %338 = vmatprep.subr.mxu0 0.0
  %339 = vmatpush1.xpose.msra.mxu0 0.0
  %340 = vmatprep.subr.mxu0 0.0
  %341 = vmatpush1.xpose.msra.mxu0 0.0
  %342 = vmatprep.subr.mxu0 0.0
  %343 = vmatpush1.xpose.msra.mxu0 0.0
  %344 = vmatprep.subr.mxu0 0.0
  %345 = vmatpush1.xpose.msra.mxu0 0.0
  %346 = vmatprep.subr.mxu0 0.0
  %347 = vmatpush1.xpose.msra.mxu0 0.0
  %348 = vmatprep.subr.mxu0 0.0
  %349 = vmatpush1.xpose.msra.mxu0 0.0
  %350 = vmatprep.subr.mxu0 0.0
  %351 = vmatpush1.xpose.msra.mxu0 0.0
  %352 = vmatprep.subr.mxu0 0.0
  %353 = vmatpush1.xpose.msra.mxu0 0.0
  %354 = vmatprep.subr.mxu0 0.0
  %355 = vmatpush1.xpose.msra.mxu0 0.0
  %356 = vmatprep.subr.mxu0 0.0
  %357 = vmatpush1.xpose.msra.mxu0 0.0
  %358 = vmatprep.subr.mxu0 0.0
  %359 = vmatpush1.xpose.msra.mxu0 0.0
  %360 = vmatprep.subr.mxu0 0.0
  %361 = vmatpush1.xpose.msra.mxu0 0.0
  %362 = vmatprep.subr.mxu0 0.0
  %363 = vmatpush1.xpose.msra.mxu0 0.0
  %364 = vmatprep.subr.mxu0 0.0
  %365 = vmatpush1.xpose.msra.mxu0 0.0
  %366 = vmatprep.mubr.f32.mxu0 0.0
  %367 = vmatmul.mubr.f32.gmra.mrb[0].mxu0 %v300
  %v368 = vpop.f32.mrb[0].mxu0
  %v369 = vadd.f32 0.0, %v368
  %v370 = vpop.f32.mrb[0].mxu0
  %371 = vdwg.mxu0
  %vm372 = vcmp.lt.s32.totalorder %v240, 2
  %vm373 = vcmp.lt.s32.totalorder %v238, 2
  %vm374 = vmand %vm372, %vm373
  %vm375 = vcmp.eq.s32.totalorder %v240, %v238
  %vm376 = vmand %vm375, %vm374
  %v377 = vsel %vm376, 1, 0
  %v378 = vcvt.s32.f32 %v377
  %v379 = vsel %vm374, %v369, -1e+30
  %vm380 = vcmask 64512
  %v381 = vsel %vm380, %v379, -inf
  %382 = vmax.xlane.f32.xlu0 %v381
  %v383 = vpop.xlane.xlu0 %382
  %v384 = vsub.f32 %v379, %v383
  %v385 = vmul.f32 %v384, 1.442695
  %v386 = vpow.pop %v385
  %v387 = vsel %vm380, %v386, 0.0
  %388 = vadd.xlane.f32.xlu0 %v387
  %v389 = vpop.xlane.xlu0 %388
  %v390 = vlog2.pop %v389
  %v391 = vmul.f32 %v390, 0.6931472
  %v392 = vadd.f32 %v391, %v383
  %v393 = vsub.f32 %v379, %v392
  %v394 = vmul.f32 %v378, %v393
  %v395 = vsel %vm380, %v394, 0.0
  %396 = vadd.xlane.f32.xlu0 %v395
  %v397 = vpop.xlane.xlu0 %396
  %v398 = vrot.slane %v397, 4
  %v399 = vadd.f32 %v397, %v398
  %v400 = vrot.slane %v399, 2
  %v401 = vadd.f32 %v399, %v400
  %v402 = vrot.slane %v401, 1
  %v403 = vadd.f32 %v401, %v402
  %v404 = vsub.f32 0.0, %v403
  %v405 = vmul.f32 %v404, 0.5
  %v406 = vrot.slane %v381, 4
  %v407 = vmax.f32 %v381, %v406
  %v408 = vrot.slane %v407, 2
  %v409 = vmax.f32 %v407, %v408
  %v410 = vrot.slane %v409, 1
  %v411 = vmax.f32 %v409, %v410
  %v412 = vsub.f32 %v379, %v411
  %v413 = vmul.f32 %v412, 1.442695
  %v414 = vpow.pop %v413
  %v415 = vsel %vm380, %v414, 0.0
  %v416 = vrot.slane %v415, 4
  %v417 = vadd.f32 %v415, %v416
  %v418 = vrot.slane %v417, 2
  %v419 = vadd.f32 %v417, %v418
  %v420 = vrot.slane %v419, 1
  %v421 = vadd.f32 %v419, %v420
  %v422 = vlog2.pop %v421
  %v423 = vmul.f32 %v422, 0.6931472
  %v424 = vadd.f32 %v423, %v411
  %v425 = vsub.f32 %v379, %v424
  %v426 = vmul.f32 %v378, %v425
  %v427 = vsel %vm380, %v426, 0.0
  %428 = vadd.xlane.f32.xlu0 %v427
  %v429 = vpop.xlane.xlu0 %428
  %v430 = vrot.slane %v429, 4
  %v431 = vadd.f32 %v429, %v430
  %v432 = vrot.slane %v431, 2
  %v433 = vadd.f32 %v431, %v432
  %v434 = vrot.slane %v433, 1
  %v435 = vadd.f32 %v433, %v434
  %v436 = vsub.f32 0.0, %v435
  %v437 = vmul.f32 %v436, 0.5
  %v438 = vadd.f32 %v405, %v437
  %v439 = vmul.f32 %v438, 0.5
  %v440 = vmul.f32 %v369, %v378
  %v441 = vsel %vm380, %v440, 0.0
  %442 = vadd.xlane.f32.xlu0 %v441
  %v443 = vpop.xlane.xlu0 %442
  %v444 = vrot.slane %v441, 4
  %v445 = vadd.f32 %v441, %v444
  %v446 = vrot.slane %v445, 2
  %v447 = vadd.f32 %v445, %v446
  %v448 = vrot.slane %v447, 1
  %v449 = vadd.f32 %v447, %v448
  %vm450 = vcmp.ge.f32.partialorder %v443, %v383
  %vm451 = vmand %vm450, %vm372
  %v452 = vsel %vm451, 1, 0
  %v453 = vcvt.s32.f32 %v452
  %v454 = vadd.f32 %v453, 0.0
  %v455 = vrot.slane %v454, 4
  %v456 = vadd.f32 %v454, %v455
  %v457 = vrot.slane %v456, 2
  %v458 = vadd.f32 %v456, %v457
  %v459 = vrot.slane %v458, 1
  %v460 = vadd.f32 %v458, %v459
  %v461 = vmul.f32 %v460, 0.5
  %vm462 = vcmp.ge.f32.partialorder %v449, %v411
  %vm463 = vmand %vm462, %vm373
  %v464 = vsel %vm463, 1, 0
  %v465 = vcvt.s32.f32 %v464
  %v466 = vsel %vm380, %v465, 0.0
  %467 = vadd.xlane.f32.xlu0 %v466
  %v468 = vpop.xlane.xlu0 %467
  %v469 = vadd.f32 %v468, 0.0
  %v470 = vmul.f32 %v469, 0.5
  %vm471 = vcmp.eq.s32.totalorder %v238, 0
  %v472 = vsel %vm471, %v439, 0.0
  %vm473 = vcmp.eq.s32.totalorder %v238, 1
  %v474 = vsel %vm473, %v461, 0.0
  %v475 = vadd.f32 %v472, %v474
  %vm476 = vcmp.eq.s32.totalorder %v238, 2
  %v477 = vsel %vm476, %v470, 0.0
  %v478 = vadd.f32 %v475, %v477
  %vm479 = vcmp.eq.s32.totalorder %v240, 7
  %v480 = vsel %vm479, %v478, %v298
  %481 = vst [vmem:[%s3] sm:$0xff] %v480
  // Predicated region
  $region14: #{custom_model_forward.1} parent=0 // pred_check
    _
  $region15: #{custom_model_forward.1} parent=0 // pred_check_branch
    %483 = sbr.rel (0) target = $region17
  $region16: #{custom_model_forward.1} parent=0 // pred_region
    _
  $region17: #{custom_model_forward.1} parent=0 // pred_fallthru
    _
  // Predicated region
  $region18: #{custom_model_forward.1} parent=0 // pred_check
    _
  $region19: #{custom_model_forward.1} parent=0 // pred_check_branch
    %485 = sbr.rel (0) target = $region21
  $region20: #{custom_model_forward.1} parent=0 // pred_region
    _
  $region21: #{custom_model_forward.1} parent=0 // pred_fallthru
    _

</llo_original>
